<compile_context>
chip_gen: v7x
topology: tpu7x:2x2x1
jax: 0.10.0
libtpu: 0.0.40
codegen_flags: <defaults>
</compile_context>

<pallas_src>
import jax
import jax.numpy as jnp
from jax.experimental import pallas as pl
from jax.experimental.pallas import tpu as pltpu


_LANE = 128
_MAX_VMEM_LIMIT = 40 * 2**20   # v7x-safe cap (64 MiB physical VMEM per core)
_VMEM_HEADROOM = 8 * 2**20     # headroom for Mosaic relayout scratch


def _round_up(x: int, m: int) -> int:
    return (x + m - 1) // m * m


def _sublane(itemsize: int) -> int:
    # Sublane granule: 8 rows for f32, 16 for bf16, 32 for int8.
    return max(8, 32 // itemsize)


def _padded_block_bytes(rows: int, cols: int, itemsize: int) -> int:
    """Real VMEM footprint of a (rows, cols) block (lane dim padded to 128,
    sublane dim padded to the dtype's sublane granule)."""
    return _round_up(rows, _sublane(itemsize)) * _round_up(cols, _LANE) * itemsize


def _transpose2d_kernel(x_ref, o_ref):
    # x_ref: (t_hw, t_c) tile; o_ref: (t_c, t_hw) tile.  Pure minor-dim swap.
    o_ref[...] = x_ref[...].T


def _choose_tiles(hw: int, c: int, itemsize: int, budget: int):
    """Pick (t_hw, t_c) whose PADDED per-buffer footprints each fit `budget`.

    `hw` is a multiple of 128 (the wrapper pads).  Prefers a full-C tile;
    tiles C (multiples of 128) only when full C would force the HW tile below
    ~512 rows (short output DMA rows, many grid steps).  Returns None if even
    the smallest candidate overflows the budget.
    """
    def fits(th, tc):
        return (_padded_block_bytes(th, tc, itemsize) <= budget and
                _padded_block_bytes(tc, th, itemsize) <= budget)

    if hw % _LANE == 0:
        hw_cands = [t for t in range(hw, 0, -_LANE) if hw % t == 0]
    else:  # safety; not hit after wrapper-side padding
        hw_cands = [hw]

    c_cands = [c]
    if c % _LANE == 0:
        c_cands += [t for t in range(c - _LANE, 0, -_LANE) if c % t == 0]

    best = None
    for tc in c_cands:                      # full C first
        th = next((t for t in hw_cands if fits(t, tc)), None)   # largest HW tile
        if th is None:
            continue
        if best is None:
            best = (th, tc)
        if th >= min(hw, 512):              # long output rows -> done
            best = (th, tc)
            break
    return best


def to_channels_first(x: jax.Array,
                      per_buffer_budget_bytes: int = 6 * 2**20) -> jax.Array:
    """x: (N, H, W, C)  ->  (N, C, H, W)  (== torch x.permute(0, 3, 1, 2))."""
    N, H, W, C = x.shape
    HW = H * W
    itemsize = jnp.dtype(x.dtype).itemsize

    # Small-C path (C <= 8, the common RGB/RGBA image case): a Pallas tile
    # would waste ~16-43x of lanes / VMEM / XLU work; XLA's native transpose
    # stays at the HBM roofline.
    # TODO(synk): a Pallas small-C path would need a 32-bit channel pack
    # (pltpu.bitcast) or a 128-lane-granule 3D permute; not implemented.
    if C <= 8:
        return jnp.transpose(x, (0, 3, 1, 2))

    # Free contiguous reshape: batched 2D transpose with a lane-dense output.
    x2 = x.reshape(N, HW, C)

    # Pad HW to a multiple of 128 so all blocks keep (8,128)-aligned,
    # unmasked lane-dense stores; pad rows are sliced off afterwards.
    HW_p = _round_up(HW, _LANE)
    if HW_p != HW:
        x2 = jnp.pad(x2, ((0, 0), (0, HW_p - HW), (0, 0)))

    tiles = _choose_tiles(HW_p, C, itemsize, per_buffer_budget_bytes)
    if tiles is None:
        # Pathological shape where even minimal blocks overflow the budget.
        return jnp.transpose(x, (0, 3, 1, 2))
    t_hw, t_c = tiles

    # v7x has 2 TensorCores: guarantee >= 2 parallel grid points for N == 1
    # inputs that would otherwise fit in a single block.
    if (N == 1 and t_c == C and t_hw == HW_p and HW_p >= 256
            and (HW_p // 2) % _LANE == 0):
        t_hw = HW_p // 2

    n_hw = HW_p // t_hw
    n_c = C // t_c

    padded_in = _padded_block_bytes(t_hw, t_c, itemsize)
    padded_out = _padded_block_bytes(t_c, t_hw, itemsize)
    vmem_limit = int(min(_MAX_VMEM_LIMIT,
                         2 * (padded_in + padded_out) + _VMEM_HEADROOM))

    # TODO(synk): for many tiny blocks, pipeline_mode=pl.Buffered(3) on the
    # input spec may hide DMA latency further (needs a sweep); for bf16 on
    # v7x an MXU-based 128x128 sub-tile transpose could offload the XLU.
    y2 = pl.pallas_call(
        _transpose2d_kernel,
        out_shape=jax.ShapeDtypeStruct((N, C, HW_p), x.dtype),
        grid_spec=pltpu.PrefetchScalarGridSpec(
            num_scalar_prefetch=0,
            grid=(N, n_c, n_hw),
            in_specs=[
                pl.BlockSpec((pl.Squeezed(), t_hw, t_c),
                             lambda n, c, h: (n, h, c)),
            ],
            out_specs=pl.BlockSpec((pl.Squeezed(), t_c, t_hw),
                                   lambda n, c, h: (n, c, h)),
        ),
        compiler_params=pltpu.CompilerParams(
            dimension_semantics=("parallel", "parallel", "parallel"),
            vmem_limit_bytes=vmem_limit,
        ),
        cost_estimate=pl.CostEstimate(
            flops=0,
            transcendentals=0,
            bytes_accessed=2 * N * HW * C * itemsize,
        ),
    )(x2)

    if HW_p != HW:
        y2 = y2[:, :, :HW]
    return y2.reshape(N, C, H, W)


if __name__ == "__main__":
    key = jax.random.PRNGKey(0)

    def check(x, **kw):
        y = jax.block_until_ready(to_channels_first(x, **kw))
        ref = jnp.transpose(x, (0, 3, 1, 2))
        assert y.shape == ref.shape, (y.shape, ref.shape)
        assert y.dtype == x.dtype
        assert jnp.array_equal(y, ref)

    # Test 1: module-spec shape (batch=2, 16x16 spatial, C=4) -> small-C path.
    check(jax.random.normal(key, (2, 16, 16, 4), dtype=jnp.float32))

    # Test 2: Pallas path, one block per batch element (grid (2,1,1)).
    check(jax.random.normal(jax.random.PRNGKey(1), (2, 8, 16, 128),
                            dtype=jnp.float32))

    # Test 3: N==1 single-block input -> forced >=2 grid points (grid (1,1,2)).
    check(jax.random.normal(jax.random.PRNGKey(2), (1, 16, 16, 128),
                            dtype=jnp.float32))

    # Test 4: tiny budget forces both HW- and C-tiling (grid (1,2,4)).
    check(jax.random.normal(jax.random.PRNGKey(3), (1, 16, 32, 256),
                            dtype=jnp.float32),
          per_buffer_budget_bytes=64 * 1024)

    # Test 5: H*W (= 81) not a multiple of 128 -> wrapper pad + slice path.
    check(jax.random.normal(jax.random.PRNGKey(4), (1, 9, 9, 128),
                            dtype=jnp.float32))

    # Test 6: bf16 (different sublane granule in the padded-footprint math).
    check(jax.random.normal(jax.random.PRNGKey(5), (2, 8, 16, 128),
                            dtype=jnp.bfloat16))

    print("KERNEL_OK")
</pallas_src>

<mosaic_0001>
module attributes {stable_mosaic.version = 11 : i64} {
  func.func @_transpose2d_kernel(%arg0: i32, %arg1: i32, %arg2: i32, %arg3: memref<1x128x128xf32, #tpu.memory_space<vmem>>, %arg4: memref<1x128x128xf32, #tpu.memory_space<vmem>>) attributes {dimension_semantics = [#tpu.dimension_semantics<parallel>, #tpu.dimension_semantics<parallel>, #tpu.dimension_semantics<parallel>], iteration_bounds = array<i64: 2, 1, 1>, scalar_prefetch = 0 : i64, scratch_operands = 0 : i64, tpu.core_type = #tpu.core_type<tc>, window_params = [{transform_indices = @transform_0, window_bounds = array<i64: 1, 128, 128>}, {transform_indices = @transform_1, window_bounds = array<i64: 1, 128, 128>}]} {
    %c0 = arith.constant 0 : index
    %c0_0 = arith.constant 0 : index
    %c0_1 = arith.constant 0 : index
    %0 = vector.load %arg3[%c0, %c0_0, %c0_1] : memref<1x128x128xf32, #tpu.memory_space<vmem>>, vector<1x128x128xf32>
    %1 = vector.shape_cast %0 : vector<1x128x128xf32> to vector<128x128xf32>
    %2 = tpu.transpose %1, [1, 0] : vector<128x128xf32> -> vector<128x128xf32>
    %c0_2 = arith.constant 0 : index
    %c0_3 = arith.constant 0 : index
    %c0_4 = arith.constant 0 : index
    %3 = vector.load %arg4[%c0_2, %c0_3, %c0_4] : memref<1x128x128xf32, #tpu.memory_space<vmem>>, vector<1x128x128xf32>
    %4 = vector.shape_cast %3 : vector<1x128x128xf32> to vector<128x128xf32>
    %5 = vector.shape_cast %2 : vector<128x128xf32> to vector<1x128x128xf32>
    tpu.vector_store %arg4[%c0_2, %c0_3, %c0_4], %5 {strides = array<i32>} : memref<1x128x128xf32, #tpu.memory_space<vmem>>, vector<1x128x128xf32>,
    return
  }
  func.func @transform_0(%arg0: i32, %arg1: i32, %arg2: i32) -> (i32, i32, i32) {
    %c0_i32 = arith.constant 0 : i32
    return %arg0, %arg2, %arg1 : i32, i32, i32
  }
  func.func @transform_1(%arg0: i32, %arg1: i32, %arg2: i32) -> (i32, i32, i32) {
    %c0_i32 = arith.constant 0 : i32
    return %arg0, %arg1, %arg2 : i32, i32, i32
  }
}

</mosaic_0001>

<llo_original>
// kernel: tpu_custom_call.1
$region0: #{tpu_custom_call.1}
  #allocation0 [shape = 'u32[]', space=smem, size = 0x4, offset = 0x4, fixed_abs, tag = 'smem constant byte address 0x4 - core index']
  #allocation1 [shape = 'u32[144,128]{1,0:T(1,128)}', space=vmem, size = 0x12000, scoped, tag = 'internal scratch']
  %s0 = inlined_call_operand.hbm [shape: f32[2,128,128], index: 0, kind: input, shape index: {}]
  %s1 = inlined_call_operand.hbm [shape: f32[2,128,128], index: 1, kind: output, shape index: {}]
  %s2 = sld [smem:[#allocation0]]
  $region41: #{tpu_custom_call.1} parent=0
    _
  %s4 = ssub.s32 1, %s2
  %s5 = scalar_select 0, %s4, %s2
  $region1: #{tpu_custom_call.1} parent=0
    #allocation2 [shape = 'u8[131072]{0}', space=vmem, size = 0x20000, scoped, tag = 'input window, operand 0']
    #allocation3 [shape = 's32[2]{0}', space=sflag, size = 0x8, scoped, tag = 'scoped memory for tpu_custom_call.1']
    #allocation4 [shape = 's32[2]{0}', space=sflag, size = 0x8, scoped, tag = 'scoped memory for tpu_custom_call.1']
    #allocation5 [shape = 'u8[131072]{0}', space=vmem, size = 0x20000, scoped, tag = 'output window, operand 0']
    %6 = vsyncpa [#allocation3], 0
    %s7 = scalar_lea.sflag [#allocation3], 1
    %8 = vsyncpa %s7, 0
    %9 = vsyncpa [#allocation4], 0
    %s10 = scalar_lea.sflag [#allocation4], 1
    %11 = vsyncpa %s10, 0
    loop: start=0, step=1, limit=4
    $region2: #{tpu_custom_call.1} parent=1 // loop_pre_header
      _
    $region3: #{tpu_custom_call.1} parent=1 // loop_header
      %s13 = sphi 0, %s17
      %p14 = scmp.ge.s32.totalorder %s13, 4
      %s20 = sphi 0, %s39
      %s21 = sphi 0, %s35
      %s22 = sphi 0, %s31
      %s23 = sphi 0, %s20
      %s24 = sphi 0, %s21
      %s25 = sphi 0, %s22
      %s26 = sphi 0, %s23
      %s27 = sphi 0, %s24
      %s28 = sphi 0, %s25
      %s46 = sphi 0, %s48
      %s49 = sphi 0, %s46
      %s50 = sphi 0, %s49
      %s66 = sphi 0, %s50
      %s76 = sphi 0, %s78
      %s79 = sphi 0, %s76
      %s80 = sphi 0, %s79
      %s96 = sphi 0, %s80
    $region4: #{tpu_custom_call.1} parent=1 // loop_header_branch
      %16 = sbr.rel (%p14) target = $region8
    $region5: #{tpu_custom_call.1} parent=1 // loop_body
      %s18 = ssub.s32 %s13, 1
      %s19 = ssub.s32 %s13, 2
      %s29 = sadd.s32 1, %s22
      %p30 = scmp.ge.s32.totalorder %s29, 1
      %s31 = scalar_select %p30, 0, %s29
      %s32 = sadd.s32 1, %s21
      %s33 = scalar_select %p30, %s32, %s21
      %p34 = scmp.ge.s32.totalorder %s33, 1
      %s35 = scalar_select %p34, 0, %s33
      %s36 = sadd.s32 1, %s20
      %s37 = scalar_select %p34, %s36, %s20
      %p38 = scmp.ge.s32.totalorder %s37, 2
      %s39 = scalar_select %p38, 0, %s37
      %s40 = ssub.s32 %s20, %s39
      %s41 = ssub.s32 %s22, %s31
      %s42 = sor.u32 %s40, %s41
      %s43 = ssub.s32 %s21, %s35
      %s44 = sor.u32 %s42, %s43
      %p45 = scmp.eq.s32.totalorder %s44, 0
      %s47 = sadd.s32 %s46, 1
      %s48 = scalar_select %p45, %s46, %s47
      %p51 = pneg %p45
      %p52 = scmp.eq.s32.totalorder %s13, 1
      %p53 = por %p51, %p52
      %p54 = scmp.ne.s32.totalorder %s46, %s49
      %p55 = scmp.eq.s32.totalorder %s13, 0
      %p56 = por %p54, %p55
      %p57 = scmp.ne.s32.totalorder %s46, %s49
      %p58 = scmp.eq.s32.totalorder %s18, 1
      %p59 = por %p57, %p58
      %p60 = scmp.ne.s32.totalorder %s49, %s50
      %p61 = scmp.eq.s32.totalorder %s18, 0
      %p62 = por %p60, %p61
      %p63 = scmp.ne.s32.totalorder %s49, %s50
      %p64 = scmp.eq.s32.totalorder %s19, 1
      %p65 = por %p63, %p64
      %p67 = scmp.ne.s32.totalorder %s50, %s66
      %p68 = scmp.eq.s32.totalorder %s19, 0
      %p69 = por %p67, %p68
      %s70 = ssub.s32 %s20, %s39
      %s71 = ssub.s32 %s21, %s35
      %s72 = sor.u32 %s70, %s71
      %s73 = ssub.s32 %s22, %s31
      %s74 = sor.u32 %s72, %s73
      %p75 = scmp.eq.s32.totalorder %s74, 0
      %s77 = sadd.s32 %s76, 1
      %s78 = scalar_select %p75, %s76, %s77
      %p81 = pneg %p75
      %p82 = scmp.eq.s32.totalorder %s13, 1
      %p83 = por %p81, %p82
      %p84 = scmp.ne.s32.totalorder %s76, %s79
      %p85 = scmp.eq.s32.totalorder %s13, 0
      %p86 = por %p84, %p85
      %p87 = scmp.ne.s32.totalorder %s76, %s79
      %p88 = scmp.eq.s32.totalorder %s18, 1
      %p89 = por %p87, %p88
      %p90 = scmp.ne.s32.totalorder %s79, %s80
      %p91 = scmp.eq.s32.totalorder %s18, 0
      %p92 = por %p90, %p91
      %p93 = scmp.ne.s32.totalorder %s79, %s80
      %p94 = scmp.eq.s32.totalorder %s19, 1
      %p95 = por %p93, %p94
      %p97 = scmp.ne.s32.totalorder %s80, %s96
      %p98 = scmp.eq.s32.totalorder %s19, 0
      %p99 = por %p97, %p98
      %p100 = scmp.le.s32.totalorder 1, %s13
      %p101 = scmp.lt.s32.totalorder %s13, 3
      %p102 = pnand %p100, %p101
      %p103 = pneg %p102
      // Predicated region
      $region9: #{tpu_custom_call.1} parent=5 // pred_check
        _
      $region10: #{tpu_custom_call.1} parent=5 // pred_check_branch
        %105 = sbr.rel (%p102) target = $region12
      $region11: #{tpu_custom_call.1} parent=5 // pred_region
        %s106 = ssub.s32 %s13, 1
      $region12: #{tpu_custom_call.1} parent=5 // pred_fallthru
        _
      %p107 = scmp.lt.s32.totalorder %s13, 2
      // Predicated region
      $region13: #{tpu_custom_call.1} parent=5 // pred_check
        %p108 = pneg %p107
      $region14: #{tpu_custom_call.1} parent=5 // pred_check_branch
        %110 = sbr.rel (%p108) target = $region16
      $region15: #{tpu_custom_call.1} parent=5 // pred_region
        // Predicated region
        $region17: #{tpu_custom_call.1} parent=15 // pred_check
          %p111 = pneg %p56
        $region18: #{tpu_custom_call.1} parent=15 // pred_check_branch
          %113 = sbr.rel (%p111) target = $region20
        $region19: #{tpu_custom_call.1} parent=15 // pred_region
          %s114 = sand.u32 %s46, 1
          %s115 = scalar_lea.sflag [#allocation3], %s114
          %s116 = sand.u32 %s46, 1
          %s117 = smul.addr %s116, 128
          %s118 = scalar_lea.vmem [#allocation2], %s117
          %s119 = smul.u32 16, %s22
          %s121 = ssub.s32 2048, 2048
          %122 = vsyncadd %s115, %s121
          %s123 = sadd.s32 %s21, %s119
          %s124 = smul.addr %s20, 16
          %s125 = sadd.s32 %s123, %s124
          %s126 = smul.addr %s125, 128
          %s127 = scalar_lea.hbm %s0, %s126
          %s128 = sshll.u32 %s118, 4
          %s129 = int_to_ptr.vmem [resolvable:$true] %s128
          %134 = dma.hbm_to_vmem [thread:$0]  %s127, 2048, %s129, %s115, 128, 128, 8
        $region20: #{tpu_custom_call.1} parent=15 // pred_fallthru
          _
      $region16: #{tpu_custom_call.1} parent=5 // pred_fallthru
        _
      %p135 = scmp.le.s32.totalorder 1, %s13
      %p136 = scmp.lt.s32.totalorder %s13, 3
      %p137 = pnand %p135, %p136
      %p138 = pneg %p137
      // Predicated region
      $region21: #{tpu_custom_call.1} parent=5 // pred_check
        _
      $region22: #{tpu_custom_call.1} parent=5 // pred_check_branch
        %140 = sbr.rel (%p137) target = $region24
      $region23: #{tpu_custom_call.1} parent=5 // pred_region
        %s141 = ssub.s32 %s13, 1
        %s142 = sand.u32 %s49, 1
        %s143 = scalar_lea.sflag [#allocation3], %s142
        %s144 = sand.u32 %s49, 1
        %s145 = smul.addr %s144, 128
        %s146 = scalar_lea.vmem [#allocation2], %s145
        // Predicated region
        $region25: #{tpu_custom_call.1} parent=23 // pred_check
          %p147 = pneg %p62
        $region26: #{tpu_custom_call.1} parent=23 // pred_check_branch
          %149 = sbr.rel (%p147) target = $region28
        $region27: #{tpu_custom_call.1} parent=23 // pred_region
          %150 = dma.done %s143, 2048
        $region28: #{tpu_custom_call.1} parent=23 // pred_fallthru
          _
        %s151 = sand.u32 %s49, 1
        %s152 = scalar_lea.sflag [#allocation3], %s151
        %s153 = sand.u32 %s49, 1
        %s154 = smul.addr %s153, 128
        %s155 = scalar_lea.vmem [#allocation2], %s154
        %p156 = pneg %p62
        %p157 = pneg %p59
        %p158 = pneg %p92
        %p159 = pneg %p89
        %s160 = sand.u32 %s79, 1
        %s161 = scalar_lea.sflag [#allocation4], %s160
        %s162 = sand.u32 %s79, 1
        %s163 = smul.addr %s162, 128
        %s164 = scalar_lea.vmem [#allocation5], %s163
        %s165 = smul.u32 16, %s25
        %s166 = smul.u32 16, %s24
        %v167 = vld [vmem:[%s146] sm:$0xff]
        %v168 = vld [vmem:[%s146 + $0x8] sm:$0xff]
        %v169 = vld [vmem:[%s146 + $0x10] sm:$0xff]
        %v170 = vld [vmem:[%s146 + $0x18] sm:$0xff]
        %v171 = vld [vmem:[%s146 + $0x20] sm:$0xff]
        %v172 = vld [vmem:[%s146 + $0x28] sm:$0xff]
        %v173 = vld [vmem:[%s146 + $0x30] sm:$0xff]
        %v174 = vld [vmem:[%s146 + $0x38] sm:$0xff]
        %v175 = vld [vmem:[%s146 + $0x40] sm:$0xff]
        %v176 = vld [vmem:[%s146 + $0x48] sm:$0xff]
        %v177 = vld [vmem:[%s146 + $0x50] sm:$0xff]
        %v178 = vld [vmem:[%s146 + $0x58] sm:$0xff]
        %v179 = vld [vmem:[%s146 + $0x60] sm:$0xff]
        %v180 = vld [vmem:[%s146 + $0x68] sm:$0xff]
        %v181 = vld [vmem:[%s146 + $0x70] sm:$0xff]
        %v182 = vld [vmem:[%s146 + $0x78] sm:$0xff]
        %183 = vxpose.xlu0.b32.start [1/16] %v167, 128
        %184 = vxpose.xlu0.b32.cont [2/16] %v168, 128
        %185 = vxpose.xlu0.b32.cont [3/16] %v169, 128
        %186 = vxpose.xlu0.b32.cont [4/16] %v170, 128
        %187 = vxpose.xlu0.b32.cont [5/16] %v171, 128
        %188 = vxpose.xlu0.b32.cont [6/16] %v172, 128
        %189 = vxpose.xlu0.b32.cont [7/16] %v173, 128
        %190 = vxpose.xlu0.b32.cont [8/16] %v174, 128
        %191 = vxpose.xlu0.b32.cont [9/16] %v175, 128
        %192 = vxpose.xlu0.b32.cont [10/16] %v176, 128
        %193 = vxpose.xlu0.b32.cont [11/16] %v177, 128
        %194 = vxpose.xlu0.b32.cont [12/16] %v178, 128
        %195 = vxpose.xlu0.b32.cont [13/16] %v179, 128
        %196 = vxpose.xlu0.b32.cont [14/16] %v180, 128
        %197 = vxpose.xlu0.b32.cont [15/16] %v181, 128
        %198 = vxpose.xlu0.b32.end [16/16] %v182, 128
        %v199 = vpop.trf.xlu0
        %v200 = vpop.trf.xlu0
        %v201 = vpop.trf.xlu0
        %v202 = vpop.trf.xlu0
        %v203 = vpop.trf.xlu0
        %v204 = vpop.trf.xlu0
        %v205 = vpop.trf.xlu0
        %v206 = vpop.trf.xlu0
        %v207 = vpop.trf.xlu0
        %v208 = vpop.trf.xlu0
        %v209 = vpop.trf.xlu0
        %v210 = vpop.trf.xlu0
        %v211 = vpop.trf.xlu0
        %v212 = vpop.trf.xlu0
        %v213 = vpop.trf.xlu0
        %v214 = vpop.trf.xlu0
        %215 = vst [vmem:[%s164] sm:$0xff] %v199
        %216 = vst [vmem:[%s164 + $0x8] sm:$0xff] %v200
        %217 = vst [vmem:[%s164 + $0x10] sm:$0xff] %v201
        %218 = vst [vmem:[%s164 + $0x18] sm:$0xff] %v202
        %219 = vst [vmem:[%s164 + $0x20] sm:$0xff] %v203
        %220 = vst [vmem:[%s164 + $0x28] sm:$0xff] %v204
        %221 = vst [vmem:[%s164 + $0x30] sm:$0xff] %v205
        %222 = vst [vmem:[%s164 + $0x38] sm:$0xff] %v206
        %223 = vst [vmem:[%s164 + $0x40] sm:$0xff] %v207
        %224 = vst [vmem:[%s164 + $0x48] sm:$0xff] %v208
        %225 = vst [vmem:[%s164 + $0x50] sm:$0xff] %v209
        %226 = vst [vmem:[%s164 + $0x58] sm:$0xff] %v210
        %227 = vst [vmem:[%s164 + $0x60] sm:$0xff] %v211
        %228 = vst [vmem:[%s164 + $0x68] sm:$0xff] %v212
        %229 = vst [vmem:[%s164 + $0x70] sm:$0xff] %v213
        %230 = vst [vmem:[%s164 + $0x78] sm:$0xff] %v214
        %s231 = sand.u32 %s79, 1
        %s232 = scalar_lea.sflag [#allocation4], %s231
        %s233 = sand.u32 %s79, 1
        %s234 = smul.addr %s233, 128
        %s235 = scalar_lea.vmem [#allocation5], %s234
        // Predicated region
        $region29: #{tpu_custom_call.1} parent=23 // pred_check
          %p236 = pneg %p89
        $region30: #{tpu_custom_call.1} parent=23 // pred_check_branch
          %238 = sbr.rel (%p236) target = $region32
        $region31: #{tpu_custom_call.1} parent=23 // pred_region
          %s239 = smul.u32 16, %s24
          %s241 = ssub.s32 2048, 2048
          %242 = vsyncadd %s232, %s241
          %s243 = sadd.s32 %s25, %s239
          %s244 = smul.addr %s23, 16
          %s245 = sadd.s32 %s243, %s244
          %s246 = smul.addr %s245, 128
          %s247 = scalar_lea.hbm %s1, %s246
          %s248 = sshll.u32 %s235, 4
          %s249 = int_to_ptr.vmem [resolvable:$true] %s248
          %254 = dma.vmem_to_hbm [thread:$0]  %s249, 2048, %s247, %s232, 128, 128, 8
        $region32: #{tpu_custom_call.1} parent=23 // pred_fallthru
          _
      $region24: #{tpu_custom_call.1} parent=5 // pred_fallthru
        _
      %p255 = scmp.le.s32.totalorder 2, %s13
      // Predicated region
      $region33: #{tpu_custom_call.1} parent=5 // pred_check
        %p256 = pneg %p255
      $region34: #{tpu_custom_call.1} parent=5 // pred_check_branch
        %258 = sbr.rel (%p256) target = $region36
      $region35: #{tpu_custom_call.1} parent=5 // pred_region
        %s259 = ssub.s32 %s13, 2
        // Predicated region
        $region37: #{tpu_custom_call.1} parent=35 // pred_check
          %p260 = pneg %p95
        $region38: #{tpu_custom_call.1} parent=35 // pred_check_branch
          %262 = sbr.rel (%p260) target = $region40
        $region39: #{tpu_custom_call.1} parent=35 // pred_region
          %s263 = sand.u32 %s80, 1
          %s264 = scalar_lea.sflag [#allocation4], %s263
          %s265 = sand.u32 %s80, 1
          %s266 = smul.addr %s265, 128
          %s267 = scalar_lea.vmem [#allocation5], %s266
          %268 = dma.done %s264, 2048
        $region40: #{tpu_custom_call.1} parent=35 // pred_fallthru
          _
      $region36: #{tpu_custom_call.1} parent=5 // pred_fallthru
        _
    $region6: #{tpu_custom_call.1} parent=1 // loop_footer
      %s17 = sadd.s32 1, %s13
    $region7: #{tpu_custom_call.1} parent=1 // loop_footer_branch
      %12 = sbr.rel target = $region3
    $region8: #{tpu_custom_call.1} parent=1 // loop_exit
      _
    %269 = vsyncpa [#allocation3], 1
    %s270 = scalar_lea.sflag [#allocation3], 1
    %271 = vsyncpa %s270, 1
    %272 = vsyncpa [#allocation4], 1
    %s273 = scalar_lea.sflag [#allocation4], 1
    %274 = vsyncpa %s273, 1

</llo_original>
